<compile_context>
chip_gen: v5e
topology: v5e:2x2
jax: 0.10.0
libtpu: 0.0.40
codegen_flags: <defaults>
</compile_context>

<pallas_src>
import functools
import math

import jax
import jax.numpy as jnp
from jax.experimental import pallas as pl
from jax.experimental.pallas import tpu as pltpu

LOG_SIG_MAX = 2.0
LOG_SIG_MIN = -20.0

LANE = 128
SUBLANE = 8
_BIG = 3.0e38  # finite clamp sentinel, representable in f32 and bf16


def _round_up(x, m):
    return ((x + m - 1) // m) * m


# ---------------------------------------------------------------------------
# Kernel: fused MLP forward on one batch tile.
# ---------------------------------------------------------------------------
def _policy_kernel(state_ref, z_ref, p1_ref, p2_ref, p3_ref, out_ref, *,
                   state_dim, sdp, h1p, h2p, act_dtype):
    # ---- hidden layer 1 (concat eliminated) ---------------------------------
    # h = relu(state @ W1_state + z * W1_z + b1)
    w1s = p1_ref[:state_dim, :]                       # [state_dim, h1p]
    w1z = p1_ref[sdp:sdp + 1, :]                      # [1, h1p]  (8-aligned row)
    b1 = p1_ref[sdp + 8:sdp + 9, :]                   # [1, h1p]  (8-aligned row)
    h = jnp.dot(state_ref[...], w1s, preferred_element_type=jnp.float32)
    h = h + z_ref[...].astype(jnp.float32) * w1z.astype(jnp.float32) \
          + b1.astype(jnp.float32)
    h = jnp.maximum(h, 0.0).astype(act_dtype)

    # ---- hidden layer 2 ------------------------------------------------------
    w2 = p2_ref[:h1p, :]                              # [h1p, h2p]
    b2 = p2_ref[h1p:h1p + 1, :]                       # [1, h2p]
    h = jnp.dot(h, w2, preferred_element_type=jnp.float32) + b2.astype(jnp.float32)
    h = jnp.maximum(h, 0.0).astype(act_dtype)

    # ---- fused heads (mean | log_std), single MXU pass + single store -------
    wh = p3_ref[:h2p, :]                              # [h2p, head_pad]
    bh = p3_ref[h2p:h2p + 1, :]                       # [1, head_pad]
    lo = p3_ref[h2p + 8:h2p + 9, :]                   # per-column lower bound
    hi = p3_ref[h2p + 16:h2p + 17, :]                 # per-column upper bound
    heads = jnp.dot(h, wh, preferred_element_type=jnp.float32) + bh.astype(jnp.float32)
    # clamp via precomputed bound rows (no per-step iota/mask generation):
    # mean columns get (-3e38, 3e38) -> no-op; log_std columns get (-20, 2).
    heads = jnp.minimum(jnp.maximum(heads, lo.astype(jnp.float32)),
                        hi.astype(jnp.float32))

    out_ref[...] = heads.astype(out_ref.dtype)


# ---------------------------------------------------------------------------
# Parameter construction (mirrors xavier_uniform weights / zero biases of the
# PyTorch module) and packing into 3 lane-padded, sublane-aligned buffers.
# ---------------------------------------------------------------------------
def xavier_uniform(key, fan_in, fan_out):
    limit = math.sqrt(6.0 / (fan_in + fan_out))
    # stored [in, out] so the kernel does x @ W
    return jax.random.uniform(key, (fan_in, fan_out), jnp.float32, -limit, limit)


def make_params(key, state_dim, hidden_dims, action_dim):
    in_dim = state_dim + 1  # +1 for z_arr
    k1, k2, k3, k4 = jax.random.split(key, 4)
    h1, h2 = hidden_dims
    return {
        "w1": xavier_uniform(k1, in_dim, h1),
        "b1": jnp.zeros((1, h1), jnp.float32),
        "w2": xavier_uniform(k2, h1, h2),
        "b2": jnp.zeros((1, h2), jnp.float32),
        "wm": xavier_uniform(k3, h2, action_dim),
        "bm": jnp.zeros((1, action_dim), jnp.float32),
        "ws": xavier_uniform(k4, h2, action_dim),
        "bs": jnp.zeros((1, action_dim), jnp.float32),
    }


def pack_params(p, state_dim, action_dim, param_dtype=jnp.float32):
    """Pack 9 param arrays into 3 lane-padded, sublane-aligned buffers."""
    w1, b1 = p["w1"], p["b1"]
    w2, b2 = p["w2"], p["b2"]
    wm, bm = p["wm"], p["bm"]
    ws, bs = p["ws"], p["bs"]

    h1 = w1.shape[1]
    h2 = w2.shape[1]
    a = action_dim
    sdp = _round_up(state_dim, SUBLANE)
    h1p = _round_up(h1, LANE)
    h2p = _round_up(h2, LANE)
    head_pad = _round_up(2 * a, LANE)

    # p1 rows: [0, state_dim) = W1_state ; row sdp = W1_z ; row sdp+8 = b1
    p1 = jnp.zeros((sdp + 2 * SUBLANE, h1p), param_dtype)
    p1 = p1.at[:state_dim, :h1].set(w1[:state_dim].astype(param_dtype))
    p1 = p1.at[sdp, :h1].set(w1[state_dim].astype(param_dtype))
    p1 = p1.at[sdp + 8, :h1].set(b1[0].astype(param_dtype))

    # p2 rows: [0, h1p) = W2 ; row h1p = b2
    p2 = jnp.zeros((h1p + SUBLANE, h2p), param_dtype)
    p2 = p2.at[:h1, :h2].set(w2.astype(param_dtype))
    p2 = p2.at[h1p, :h2].set(b2[0].astype(param_dtype))

    # p3 rows: [0, h2p) = [Wm | Ws] ; row h2p = [bm | bs] ;
    #          row h2p+8 = per-column lower bound ; row h2p+16 = upper bound
    lo_row = jnp.full((head_pad,), -_BIG, jnp.float32).at[a:2 * a].set(LOG_SIG_MIN)
    hi_row = jnp.full((head_pad,), _BIG, jnp.float32).at[a:2 * a].set(LOG_SIG_MAX)
    p3 = jnp.zeros((h2p + 3 * SUBLANE, head_pad), param_dtype)
    p3 = p3.at[:h2, :a].set(wm.astype(param_dtype))
    p3 = p3.at[:h2, a:2 * a].set(ws.astype(param_dtype))
    p3 = p3.at[h2p, :a].set(bm[0].astype(param_dtype))
    p3 = p3.at[h2p, a:2 * a].set(bs[0].astype(param_dtype))
    p3 = p3.at[h2p + 8].set(lo_row.astype(param_dtype))
    p3 = p3.at[h2p + 16].set(hi_row.astype(param_dtype))

    return {
        "p1": p1, "p2": p2, "p3": p3,
        "state_dim": state_dim, "action_dim": a,
        "sdp": sdp, "h1p": h1p, "h2p": h2p, "head_pad": head_pad,
    }


# ---------------------------------------------------------------------------
# Tile selection: amortize per-grid-step overhead, keep >=4 steps at large B
# (so the batch axis shards across v7x's two TensorCores), stay well inside VMEM.
# ---------------------------------------------------------------------------
def _choose_batch_tile(B):
    if B <= 256:
        return B                                   # single step; launch-bound anyway
    tb = _round_up(pl.cdiv(B, 4), SUBLANE)         # aim for ~4 grid steps
    return max(256, min(4096, tb))


# ---------------------------------------------------------------------------
# Wrapper: pallas_call with batch grid, resident weights, lane-dense output.
# ---------------------------------------------------------------------------
def policy_forward(state, z_arr, packed, *, act_dtype=None, out_dtype=None):
    p1, p2, p3 = packed["p1"], packed["p2"], packed["p3"]
    a = packed["action_dim"]
    state_dim = packed["state_dim"]
    sdp, h1p, h2p = packed["sdp"], packed["h1p"], packed["h2p"]
    head_pad = packed["head_pad"]

    if act_dtype is None:
        act_dtype = p1.dtype                       # bf16 params => bf16 activations
    if out_dtype is None:
        out_dtype = act_dtype

    state = state.astype(act_dtype)
    z_arr = z_arr.astype(act_dtype)
    B = state.shape[0]

    tb = _choose_batch_tile(B)
    grid = (pl.cdiv(B, tb),)

    kernel = functools.partial(_policy_kernel, state_dim=state_dim, sdp=sdp,
                               h1p=h1p, h2p=h2p, act_dtype=act_dtype)

    act_bytes = jnp.dtype(act_dtype).itemsize
    out_bytes = jnp.dtype(out_dtype).itemsize
    param_bytes = sum(int(x.size) * x.dtype.itemsize for x in (p1, p2, p3))

    # VMEM budget: double-buffered I/O tiles + resident params + f32 temporaries.
    io_bytes = 2 * tb * ((state_dim + 1) * act_bytes + head_pad * out_bytes)
    interm_bytes = tb * (h1p + h2p + head_pad) * 4
    vmem_needed = io_bytes + 2 * param_bytes + interm_bytes
    vmem_limit = int(min(64 << 20, max(32 << 20, 2 * vmem_needed)))

    cost = pl.CostEstimate(
        flops=2 * B * (state_dim * h1p + h1p * h2p + h2p * head_pad),
        transcendentals=0,
        bytes_accessed=B * (state_dim + 1) * act_bytes
                       + param_bytes + B * head_pad * out_bytes,
    )

    out = pl.pallas_call(
        kernel,
        out_shape=jax.ShapeDtypeStruct((B, head_pad), out_dtype),
        grid_spec=pltpu.PrefetchScalarGridSpec(
            num_scalar_prefetch=0,
            grid=grid,
            in_specs=[
                pl.BlockSpec((tb, state_dim), lambda i: (i, 0)),  # state tile
                pl.BlockSpec((tb, 1), lambda i: (i, 0)),          # z tile
                pl.BlockSpec(p1.shape, lambda i: (0, 0)),         # weights stay resident
                pl.BlockSpec(p2.shape, lambda i: (0, 0)),
                pl.BlockSpec(p3.shape, lambda i: (0, 0)),
            ],
            out_specs=pl.BlockSpec((tb, head_pad), lambda i: (i, 0)),
        ),
        compiler_params=pltpu.CompilerParams(
            dimension_semantics=("parallel",),
            vmem_limit_bytes=vmem_limit),
        cost_estimate=cost,
    )(state, z_arr, p1, p2, p3)

    # Single slice of the padded buffer (one HBM re-read), then split the small result.
    # NOTE: columns >= 2*action_dim of `out` are unclamped zero padding by construction.
    heads = out[:, :2 * a]
    mean = heads[:, :a]
    log_std = heads[:, a:]
    return mean, log_std


# ---------------------------------------------------------------------------
# Pure-JAX reference (mirrors the PyTorch forward exactly).
# ---------------------------------------------------------------------------
def policy_forward_ref(state, z_arr, p):
    inp = jnp.concatenate([state, z_arr], axis=1)
    h = jax.nn.relu(inp @ p["w1"] + p["b1"])
    h = jax.nn.relu(h @ p["w2"] + p["b2"])
    mean = h @ p["wm"] + p["bm"]
    log_std = jnp.clip(h @ p["ws"] + p["bs"], LOG_SIG_MIN, LOG_SIG_MAX)
    return mean, log_std


if __name__ == "__main__":
    state_dim = 16
    hidden_dims = (32, 32)
    action_dim = 4

    key = jax.random.PRNGKey(0)
    kp, ks, kz, ksl, kzl = jax.random.split(key, 5)

    params = make_params(kp, state_dim, hidden_dims, action_dim)
    packed_f32 = pack_params(params, state_dim, action_dim, param_dtype=jnp.float32)

    # --- small batch, f32 (tight correctness check, grid=(1,)) ---------------
    state = jax.random.normal(ks, (8, state_dim), jnp.float32)
    z_arr = jax.random.normal(kz, (8, 1), jnp.float32)
    mean, log_std = policy_forward(state, z_arr, packed_f32)
    jax.block_until_ready((mean, log_std))
    mean_ref, log_std_ref = policy_forward_ref(state, z_arr, params)
    assert mean.shape == (8, action_dim) and log_std.shape == (8, action_dim)
    assert jnp.allclose(mean, mean_ref, atol=1e-4, rtol=1e-4)
    assert jnp.allclose(log_std, log_std_ref, atol=1e-4, rtol=1e-4)

    # --- larger batch, f32 (multi-step grid -> both TCs on v7x) --------------
    state_l = jax.random.normal(ksl, (1024, state_dim), jnp.float32)
    z_l = jax.random.normal(kzl, (1024, 1), jnp.float32)
    mean_l, log_std_l = policy_forward(state_l, z_l, packed_f32)
    jax.block_until_ready((mean_l, log_std_l))
    mean_lr, log_std_lr = policy_forward_ref(state_l, z_l, params)
    assert jnp.allclose(mean_l, mean_lr, atol=1e-4, rtol=1e-4)
    assert jnp.allclose(log_std_l, log_std_lr, atol=1e-4, rtol=1e-4)

    # --- bf16 params + activations (v6e/v7x fast path), looser tolerance -----
    packed_bf16 = pack_params(params, state_dim, action_dim, param_dtype=jnp.bfloat16)
    mean_b, log_std_b = policy_forward(state_l, z_l, packed_bf16,
                                       act_dtype=jnp.bfloat16, out_dtype=jnp.bfloat16)
    jax.block_until_ready((mean_b, log_std_b))
    assert jnp.allclose(mean_b.astype(jnp.float32), mean_lr, atol=5e-2, rtol=5e-2)
    assert jnp.allclose(log_std_b.astype(jnp.float32), log_std_lr, atol=5e-2, rtol=5e-2)

    print("KERNEL_OK")
</pallas_src>

<mosaic_0001>
module attributes {stable_mosaic.version = 11 : i64} {
  func.func @_policy_kernel(%arg0: i32, %arg1: memref<8x16xf32, #tpu.memory_space<vmem>>, %arg2: memref<8x1xf32, #tpu.memory_space<vmem>>, %arg3: memref<32x128xf32, #tpu.memory_space<vmem>>, %arg4: memref<136x128xf32, #tpu.memory_space<vmem>>, %arg5: memref<152x128xf32, #tpu.memory_space<vmem>>, %arg6: memref<8x128xf32, #tpu.memory_space<vmem>>) attributes {dimension_semantics = [#tpu.dimension_semantics<parallel>], iteration_bounds = array<i64: 1>, scalar_prefetch = 0 : i64, scratch_operands = 0 : i64, tpu.core_type = #tpu.core_type<tc>, window_params = [{transform_indices = @transform_0, window_bounds = array<i64: 8, 16>}, {transform_indices = @transform_1, window_bounds = array<i64: 8, 1>}, {pipeline_mode = #tpu.pipeline_mode<synchronous>, transform_indices = @transform_2, window_bounds = array<i64: 32, 128>}, {pipeline_mode = #tpu.pipeline_mode<synchronous>, transform_indices = @transform_3, window_bounds = array<i64: 136, 128>}, {pipeline_mode = #tpu.pipeline_mode<synchronous>, transform_indices = @transform_4, window_bounds = array<i64: 152, 128>}, {transform_indices = @transform_5, window_bounds = array<i64: 8, 128>}]} {
    %c0 = arith.constant 0 : index
    %c0_0 = arith.constant 0 : index
    %0 = vector.load %arg3[%c0, %c0_0] : memref<32x128xf32, #tpu.memory_space<vmem>>, vector<16x128xf32>
    %c16 = arith.constant 16 : index
    %c0_1 = arith.constant 0 : index
    %1 = vector.load %arg3[%c16, %c0_1] : memref<32x128xf32, #tpu.memory_space<vmem>>, vector<1x128xf32>
    %c24 = arith.constant 24 : index
    %c0_2 = arith.constant 0 : index
    %2 = vector.load %arg3[%c24, %c0_2] : memref<32x128xf32, #tpu.memory_space<vmem>>, vector<1x128xf32>
    %c0_3 = arith.constant 0 : index
    %c0_4 = arith.constant 0 : index
    %3 = vector.load %arg1[%c0_3, %c0_4] : memref<8x16xf32, #tpu.memory_space<vmem>>, vector<8x16xf32>
    %cst = arith.constant dense<0.000000e+00> : vector<8x128xf32>
    %4 = tpu.matmul %3, %0, %cst {dimension_numbers = #tpu.dot_dimension_numbers<[1], [0], [0], [1], [0, 0, 1, 1], [], []>} : vector<8x16xf32>, vector<16x128xf32>, vector<8x128xf32> -> vector<8x128xf32>
    %c0_5 = arith.constant 0 : index
    %c0_6 = arith.constant 0 : index
    %5 = vector.load %arg2[%c0_5, %c0_6] : memref<8x1xf32, #tpu.memory_space<vmem>>, vector<8x1xf32>
    %6 = vector.broadcast %5 : vector<8x1xf32> to vector<8x128xf32>
    %7 = vector.broadcast %1 : vector<1x128xf32> to vector<8x128xf32>
    %8 = arith.mulf %6, %7 : vector<8x128xf32>
    %9 = arith.addf %4, %8 : vector<8x128xf32>
    %10 = vector.broadcast %2 : vector<1x128xf32> to vector<8x128xf32>
    %11 = arith.addf %9, %10 : vector<8x128xf32>
    %cst_7 = arith.constant 0.000000e+00 : f32
    %12 = vector.broadcast %cst_7 : f32 to vector<8x128xf32>
    %13 = arith.maximumf %11, %12 : vector<8x128xf32>
    %c0_8 = arith.constant 0 : index
    %c0_9 = arith.constant 0 : index
    %14 = vector.load %arg4[%c0_8, %c0_9] : memref<136x128xf32, #tpu.memory_space<vmem>>, vector<128x128xf32>
    %c128 = arith.constant 128 : index
    %c0_10 = arith.constant 0 : index
    %15 = vector.load %arg4[%c128, %c0_10] : memref<136x128xf32, #tpu.memory_space<vmem>>, vector<1x128xf32>
    %cst_11 = arith.constant dense<0.000000e+00> : vector<8x128xf32>
    %16 = tpu.matmul %13, %14, %cst_11 {dimension_numbers = #tpu.dot_dimension_numbers<[1], [0], [0], [1], [0, 0, 1, 1], [], []>} : vector<8x128xf32>, vector<128x128xf32>, vector<8x128xf32> -> vector<8x128xf32>
    %17 = vector.broadcast %15 : vector<1x128xf32> to vector<8x128xf32>
    %18 = arith.addf %16, %17 : vector<8x128xf32>
    %cst_12 = arith.constant 0.000000e+00 : f32
    %19 = vector.broadcast %cst_12 : f32 to vector<8x128xf32>
    %20 = arith.maximumf %18, %19 : vector<8x128xf32>
    %c0_13 = arith.constant 0 : index
    %c0_14 = arith.constant 0 : index
    %21 = vector.load %arg5[%c0_13, %c0_14] : memref<152x128xf32, #tpu.memory_space<vmem>>, vector<128x128xf32>
    %c128_15 = arith.constant 128 : index
    %c0_16 = arith.constant 0 : index
    %22 = vector.load %arg5[%c128_15, %c0_16] : memref<152x128xf32, #tpu.memory_space<vmem>>, vector<1x128xf32>
    %c136 = arith.constant 136 : index
    %c0_17 = arith.constant 0 : index
    %23 = vector.load %arg5[%c136, %c0_17] : memref<152x128xf32, #tpu.memory_space<vmem>>, vector<1x128xf32>
    %c144 = arith.constant 144 : index
    %c0_18 = arith.constant 0 : index
    %24 = vector.load %arg5[%c144, %c0_18] : memref<152x128xf32, #tpu.memory_space<vmem>>, vector<1x128xf32>
    %cst_19 = arith.constant dense<0.000000e+00> : vector<8x128xf32>
    %25 = tpu.matmul %20, %21, %cst_19 {dimension_numbers = #tpu.dot_dimension_numbers<[1], [0], [0], [1], [0, 0, 1, 1], [], []>} : vector<8x128xf32>, vector<128x128xf32>, vector<8x128xf32> -> vector<8x128xf32>
    %26 = vector.broadcast %22 : vector<1x128xf32> to vector<8x128xf32>
    %27 = arith.addf %25, %26 : vector<8x128xf32>
    %28 = vector.broadcast %23 : vector<1x128xf32> to vector<8x128xf32>
    %29 = arith.maximumf %27, %28 : vector<8x128xf32>
    %30 = vector.broadcast %24 : vector<1x128xf32> to vector<8x128xf32>
    %31 = arith.minimumf %29, %30 : vector<8x128xf32>
    %c0_20 = arith.constant 0 : index
    %c0_21 = arith.constant 0 : index
    %32 = vector.load %arg6[%c0_20, %c0_21] : memref<8x128xf32, #tpu.memory_space<vmem>>, vector<8x128xf32>
    tpu.vector_store %arg6[%c0_20, %c0_21], %31 {strides = array<i32>} : memref<8x128xf32, #tpu.memory_space<vmem>>, vector<8x128xf32>,
    return
  }
  func.func @transform_0(%arg0: i32) -> (i32, i32) {
    %c0_i32 = arith.constant 0 : i32
    %c0_i32_0 = arith.constant 0 : i32
    return %arg0, %c0_i32 : i32, i32
  }
  func.func @transform_1(%arg0: i32) -> (i32, i32) {
    %c0_i32 = arith.constant 0 : i32
    %c0_i32_0 = arith.constant 0 : i32
    return %arg0, %c0_i32 : i32, i32
  }
  func.func @transform_2(%arg0: i32) -> (i32, i32) {
    %c0_i32 = arith.constant 0 : i32
    %c0_i32_0 = arith.constant 0 : i32
    %c0_i32_1 = arith.constant 0 : i32
    return %c0_i32, %c0_i32_0 : i32, i32
  }
  func.func @transform_3(%arg0: i32) -> (i32, i32) {
    %c0_i32 = arith.constant 0 : i32
    %c0_i32_0 = arith.constant 0 : i32
    %c0_i32_1 = arith.constant 0 : i32
    return %c0_i32, %c0_i32_0 : i32, i32
  }
  func.func @transform_4(%arg0: i32) -> (i32, i32) {
    %c0_i32 = arith.constant 0 : i32
    %c0_i32_0 = arith.constant 0 : i32
    %c0_i32_1 = arith.constant 0 : i32
    return %c0_i32, %c0_i32_0 : i32, i32
  }
  func.func @transform_5(%arg0: i32) -> (i32, i32) {
    %c0_i32 = arith.constant 0 : i32
    %c0_i32_0 = arith.constant 0 : i32
    return %arg0, %c0_i32 : i32, i32
  }
}

</mosaic_0001>

<llo_original>
// kernel: tpu_custom_call.1
$region0: #{tpu_custom_call.1}
  #allocation0 [shape = 'u32[]', space=smem, size = 0x4, offset = 0x4, fixed_abs, tag = 'smem constant byte address 0x4 - core index']
  #allocation1 [shape = 'u32[72,128]{1,0:T(1,128)}', space=vmem, size = 0x9000, scoped, tag = 'internal scratch']
  %s0 = inlined_call_operand.vmem [shape: f32[8,16], index: 0, kind: input, shape index: {}]
  %s1 = inlined_call_operand.vmem [shape: f32[8,1], index: 1, kind: input, shape index: {}]
  %s2 = inlined_call_operand.hbm [shape: f32[32,128], index: 2, kind: input, shape index: {}]
  %s3 = inlined_call_operand.hbm [shape: f32[136,128], index: 3, kind: input, shape index: {}]
  %s4 = inlined_call_operand.hbm [shape: f32[152,128], index: 4, kind: input, shape index: {}]
  %s5 = inlined_call_operand.hbm [shape: f32[8,128], index: 5, kind: output, shape index: {}]
  %s6 = sld [smem:[#allocation0]]
  $region42: #{tpu_custom_call.1} parent=0
    _
  %s8 = ssub.s32 1, %s6
  %s9 = scalar_select 0, %s8, %s6
  $region1: #{tpu_custom_call.1} parent=0
    #allocation2 [shape = 'u8[16384]{0}', space=vmem, size = 0x4000, scoped, tag = 'input window, operand 2, single buffered']
    #allocation3 [shape = 's32[1]{0}', space=sflag, size = 0x4, scoped, tag = 'scoped memory for tpu_custom_call.1']
    #allocation4 [shape = 's32[1]{0}', space=sflag, size = 0x4, scoped, tag = 'scoped memory for tpu_custom_call.1']
    #allocation5 [shape = 'u8[69632]{0}', space=vmem, size = 0x11000, scoped, tag = 'input window, operand 3, single buffered']
    #allocation6 [shape = 's32[1]{0}', space=sflag, size = 0x4, scoped, tag = 'scoped memory for tpu_custom_call.1']
    #allocation7 [shape = 'u8[77824]{0}', space=vmem, size = 0x13000, scoped, tag = 'input window, operand 4, single buffered']
    #allocation8 [shape = 'u8[4096]{0}', space=vmem, size = 0x1000, scoped, tag = 'output window, operand 0, single buffered']
    %10 = vsyncpa [#allocation3], 0
    %11 = vsyncpa [#allocation6], 0
    %12 = vsyncpa [#allocation4], 0
    // Predicated region
    $region2: #{tpu_custom_call.1} parent=1 // pred_check
      _
    $region3: #{tpu_custom_call.1} parent=1 // pred_check_branch
      %14 = sbr.rel (0) target = $region5
    $region4: #{tpu_custom_call.1} parent=1 // pred_region
      _
    $region5: #{tpu_custom_call.1} parent=1 // pred_fallthru
      _
    // Predicated region
    $region6: #{tpu_custom_call.1} parent=1 // pred_check
      _
    $region7: #{tpu_custom_call.1} parent=1 // pred_check_branch
      %16 = sbr.rel (0) target = $region9
    $region8: #{tpu_custom_call.1} parent=1 // pred_region
      _
    $region9: #{tpu_custom_call.1} parent=1 // pred_fallthru
      _
    // Predicated region
    $region10: #{tpu_custom_call.1} parent=1 // pred_check
      _
    $region11: #{tpu_custom_call.1} parent=1 // pred_check_branch
      %18 = sbr.rel (0) target = $region13
    $region12: #{tpu_custom_call.1} parent=1 // pred_region
      %20 = vsyncadd [#allocation3], 0
      %s21 = sshll.u32 %s2, 4
      %s22 = int_to_ptr.hbm [resolvable:$true] %s21
      %s23 = sshll.u32 [#allocation2], 4
      %s24 = int_to_ptr.vmem [resolvable:$true] %s23
      %29 = dma.hbm_to_vmem [thread:$0]  %s22, 512, %s24, [#allocation3], 128, 128, 8
    $region13: #{tpu_custom_call.1} parent=1 // pred_fallthru
      _
    // Predicated region
    $region14: #{tpu_custom_call.1} parent=1 // pred_check
      _
    $region15: #{tpu_custom_call.1} parent=1 // pred_check_branch
      %31 = sbr.rel (0) target = $region17
    $region16: #{tpu_custom_call.1} parent=1 // pred_region
      %33 = vsyncadd [#allocation6], 0
      %s34 = sshll.u32 %s3, 4
      %s35 = int_to_ptr.hbm [resolvable:$true] %s34
      %s36 = sshll.u32 [#allocation5], 4
      %s37 = int_to_ptr.vmem [resolvable:$true] %s36
      %42 = dma.hbm_to_vmem [thread:$0]  %s35, 2176, %s37, [#allocation6], 128, 128, 8
    $region17: #{tpu_custom_call.1} parent=1 // pred_fallthru
      _
    // Predicated region
    $region18: #{tpu_custom_call.1} parent=1 // pred_check
      _
    $region19: #{tpu_custom_call.1} parent=1 // pred_check_branch
      %44 = sbr.rel (0) target = $region21
    $region20: #{tpu_custom_call.1} parent=1 // pred_region
      %46 = vsyncadd [#allocation6], 0
      %s47 = sshll.u32 %s4, 4
      %s48 = int_to_ptr.hbm [resolvable:$true] %s47
      %s49 = sshll.u32 [#allocation7], 4
      %s50 = int_to_ptr.vmem [resolvable:$true] %s49
      %55 = dma.hbm_to_vmem [thread:$0]  %s48, 2432, %s50, [#allocation6], 128, 128, 8
    $region21: #{tpu_custom_call.1} parent=1 // pred_fallthru
      _
    // Predicated region
    $region22: #{tpu_custom_call.1} parent=1 // pred_check
      _
    $region23: #{tpu_custom_call.1} parent=1 // pred_check_branch
      %57 = sbr.rel (0) target = $region25
    $region24: #{tpu_custom_call.1} parent=1 // pred_region
      %59 = dma.done [#allocation3], 512
    $region25: #{tpu_custom_call.1} parent=1 // pred_fallthru
      _
    // Predicated region
    $region26: #{tpu_custom_call.1} parent=1 // pred_check
      _
    $region27: #{tpu_custom_call.1} parent=1 // pred_check_branch
      %61 = sbr.rel (0) target = $region29
    $region28: #{tpu_custom_call.1} parent=1 // pred_region
      %63 = dma.done [#allocation6], 2176
    $region29: #{tpu_custom_call.1} parent=1 // pred_fallthru
      _
    // Predicated region
    $region30: #{tpu_custom_call.1} parent=1 // pred_check
      _
    $region31: #{tpu_custom_call.1} parent=1 // pred_check_branch
      %65 = sbr.rel (0) target = $region33
    $region32: #{tpu_custom_call.1} parent=1 // pred_region
      %67 = dma.done [#allocation6], 2432
    $region33: #{tpu_custom_call.1} parent=1 // pred_fallthru
      _
    %v68 = vld [vmem:[#allocation2] sm:$0xff]
    %v69 = vld [vmem:[#allocation2 + $0x8] sm:$0xff]
    %v70 = vld [vmem:[#allocation2 + $0x10] sm:$0x1]
    %v71 = vld [vmem:[#allocation2 + $0x18] sm:$0x1]
    %v72 = vld [vmem:[%s0] sm:$0xff]
    %v73 = vld [vmem:[%s1] sm:$0xff]
    %75 = vset.pattern.permute.xlu0 0
    %76 = vperm.xlu0 %75, %v73
    %v77 = vpop.permute.xlu0 %76
    %v79 = vperm.slane %v70, 0
    %v80 = vmul.f32 %v77, %v79
    %vm81 = vcmask 130048
    %v83 = vsel %vm81, %v72, 0
    %85 = vmatpush.msra.mxu0 0.0
    %86 = vmatpush.msra.mxu0 0.0
    %87 = vmatpush.msra.mxu0 0.0
    %88 = vmatpush.msra.mxu0 0.0
    %89 = vmatpush.msra.mxu0 0.0
    %90 = vmatpush.msra.mxu0 0.0
    %91 = vmatpush.msra.mxu0 0.0
    %92 = vmatpush.msra.mxu0 0.0
    %93 = vmatpush.msra.mxu0 0.0
    %94 = vmatpush.msra.mxu0 0.0
    %95 = vmatpush.msra.mxu0 0.0
    %96 = vmatpush.msra.mxu0 0.0
    %97 = vmatpush.msra.mxu0 0.0
    %98 = vmatpush.msra.mxu0 0.0
    %99 = vmatpush.msra.mxu0 %v69
    %100 = vmatpush.msra.mxu0 %v68
    %101 = vmatmul.f32.gmra.mxu0 %v83
    %v102 = vpop.f32.mrf.mxu0
    %v103 = vadd.f32 %v80, %v102
    %104 = vdwg.mxu0
    %v105 = vperm.slane %v71, 0
    %v106 = vadd.f32 %v103, %v105
    %v107 = vmax.f32 %v106, 0.0
    %v108 = vld [vmem:[#allocation5] sm:$0xff]
    %v109 = vld [vmem:[#allocation5 + $0x8] sm:$0xff]
    %v110 = vld [vmem:[#allocation5 + $0x10] sm:$0xff]
    %v111 = vld [vmem:[#allocation5 + $0x18] sm:$0xff]
    %v112 = vld [vmem:[#allocation5 + $0x20] sm:$0xff]
    %v113 = vld [vmem:[#allocation5 + $0x28] sm:$0xff]
    %v114 = vld [vmem:[#allocation5 + $0x30] sm:$0xff]
    %v115 = vld [vmem:[#allocation5 + $0x38] sm:$0xff]
    %v116 = vld [vmem:[#allocation5 + $0x40] sm:$0xff]
    %v117 = vld [vmem:[#allocation5 + $0x48] sm:$0xff]
    %v118 = vld [vmem:[#allocation5 + $0x50] sm:$0xff]
    %v119 = vld [vmem:[#allocation5 + $0x58] sm:$0xff]
    %v120 = vld [vmem:[#allocation5 + $0x60] sm:$0xff]
    %v121 = vld [vmem:[#allocation5 + $0x68] sm:$0xff]
    %v122 = vld [vmem:[#allocation5 + $0x70] sm:$0xff]
    %v123 = vld [vmem:[#allocation5 + $0x78] sm:$0xff]
    %v124 = vld [vmem:[#allocation5 + $0x80] sm:$0x1]
    %v125 = vperm.slane %v124, 0
    %126 = vmatpush.msra.mxu0 %v123
    %127 = vmatpush.msra.mxu0 %v122
    %128 = vmatpush.msra.mxu0 %v121
    %129 = vmatpush.msra.mxu0 %v120
    %130 = vmatpush.msra.mxu0 %v119
    %131 = vmatpush.msra.mxu0 %v118
    %132 = vmatpush.msra.mxu0 %v117
    %133 = vmatpush.msra.mxu0 %v116
    %134 = vmatpush.msra.mxu0 %v115
    %135 = vmatpush.msra.mxu0 %v114
    %136 = vmatpush.msra.mxu0 %v113
    %137 = vmatpush.msra.mxu0 %v112
    %138 = vmatpush.msra.mxu0 %v111
    %139 = vmatpush.msra.mxu0 %v110
    %140 = vmatpush.msra.mxu0 %v109
    %141 = vmatpush.msra.mxu0 %v108
    %142 = vmatmul.f32.gmra.mxu0 %v107
    %v143 = vpop.f32.mrf.mxu0
    %v144 = vadd.f32 %v125, %v143
    %145 = vdwg.mxu0
    %v146 = vmax.f32 %v144, 0.0
    %v147 = vld [vmem:[#allocation7] sm:$0xff]
    %v148 = vld [vmem:[#allocation7 + $0x8] sm:$0xff]
    %v149 = vld [vmem:[#allocation7 + $0x10] sm:$0xff]
    %v150 = vld [vmem:[#allocation7 + $0x18] sm:$0xff]
    %v151 = vld [vmem:[#allocation7 + $0x20] sm:$0xff]
    %v152 = vld [vmem:[#allocation7 + $0x28] sm:$0xff]
    %v153 = vld [vmem:[#allocation7 + $0x30] sm:$0xff]
    %v154 = vld [vmem:[#allocation7 + $0x38] sm:$0xff]
    %v155 = vld [vmem:[#allocation7 + $0x40] sm:$0xff]
    %v156 = vld [vmem:[#allocation7 + $0x48] sm:$0xff]
    %v157 = vld [vmem:[#allocation7 + $0x50] sm:$0xff]
    %v158 = vld [vmem:[#allocation7 + $0x58] sm:$0xff]
    %v159 = vld [vmem:[#allocation7 + $0x60] sm:$0xff]
    %v160 = vld [vmem:[#allocation7 + $0x68] sm:$0xff]
    %v161 = vld [vmem:[#allocation7 + $0x70] sm:$0xff]
    %v162 = vld [vmem:[#allocation7 + $0x78] sm:$0xff]
    %v163 = vld [vmem:[#allocation7 + $0x80] sm:$0x1]
    %v164 = vld [vmem:[#allocation7 + $0x88] sm:$0x1]
    %v165 = vld [vmem:[#allocation7 + $0x90] sm:$0x1]
    %v166 = vperm.slane %v163, 0
    %167 = vmatpush.msra.mxu0 %v162
    %168 = vmatpush.msra.mxu0 %v161
    %169 = vmatpush.msra.mxu0 %v160
    %170 = vmatpush.msra.mxu0 %v159
    %171 = vmatpush.msra.mxu0 %v158
    %172 = vmatpush.msra.mxu0 %v157
    %173 = vmatpush.msra.mxu0 %v156
    %174 = vmatpush.msra.mxu0 %v155
    %175 = vmatpush.msra.mxu0 %v154
    %176 = vmatpush.msra.mxu0 %v153
    %177 = vmatpush.msra.mxu0 %v152
    %178 = vmatpush.msra.mxu0 %v151
    %179 = vmatpush.msra.mxu0 %v150
    %180 = vmatpush.msra.mxu0 %v149
    %181 = vmatpush.msra.mxu0 %v148
    %182 = vmatpush.msra.mxu0 %v147
    %183 = vmatmul.f32.gmra.mxu0 %v146
    %v184 = vpop.f32.mrf.mxu0
    %v185 = vadd.f32 %v166, %v184
    %186 = vdwg.mxu0
    %v187 = vperm.slane %v164, 0
    %v188 = vmax.f32 %v185, %v187
    %v189 = vperm.slane %v165, 0
    %v190 = vmin.f32 %v188, %v189
    %191 = vst [vmem:[#allocation8] sm:$0xff] %v190
    // Predicated region
    $region34: #{tpu_custom_call.1} parent=1 // pred_check
      _
    $region35: #{tpu_custom_call.1} parent=1 // pred_check_branch
      %193 = sbr.rel (0) target = $region37
    $region36: #{tpu_custom_call.1} parent=1 // pred_region
      %195 = vsyncadd [#allocation4], 0
      %s197 = sshll.u32 [#allocation8], 4
      %s198 = int_to_ptr.vmem [resolvable:$true] %s197
      %s199 = sshll.u32 %s5, 4
      %s200 = int_to_ptr.hbm [resolvable:$true] %s199
      %202 = dma.vmem_to_hbm [thread:$0]  %s198, 128, %s200, [#allocation4]
    $region37: #{tpu_custom_call.1} parent=1 // pred_fallthru
      _
    // Predicated region
    $region38: #{tpu_custom_call.1} parent=1 // pred_check
      _
    $region39: #{tpu_custom_call.1} parent=1 // pred_check_branch
      %204 = sbr.rel (0) target = $region41
    $region40: #{tpu_custom_call.1} parent=1 // pred_region
      %206 = dma.done [#allocation4], 128
    $region41: #{tpu_custom_call.1} parent=1 // pred_fallthru
      _
    %207 = vsyncpa [#allocation3], 1
    %208 = vsyncpa [#allocation6], 1
    %209 = vsyncpa [#allocation4], 1

</llo_original>
